<compile_context>
chip_gen: v7x
topology: tpu7x:2x2x1
jax: 0.10.0
libtpu: 0.0.40
codegen_flags: <defaults>
</compile_context>

<pallas_src>
import functools

import jax
import jax.numpy as jnp
from jax.experimental import pallas as pl
from jax.experimental.pallas import tpu as pltpu


def _round_up(v: int, m: int) -> int:
    return ((v + m - 1) // m) * m


def _sublane_multiple(dtype) -> int:
    # f32 -> 8, bf16 -> 16, int8/fp8 -> 32 (packed vreg sublane tiling).
    itemsize = jnp.dtype(dtype).itemsize
    return max(8, 32 // itemsize)


def _vmem_limit_bytes() -> int:
    try:
        cap = pltpu.get_tpu_info().vmem_capacity_bytes
        return int(cap * 0.85)  # ~54 MiB on v7x (64 MiB part), ~108 MiB on v5e/v6e (128 MiB)
    except Exception:
        return 48 * 1024 * 1024  # conservative fallback, safe on every generation


def _silu_after(i: int, n_layers: int) -> bool:
    # Matches the nn.Sequential construction: SiLU after the first Linear and after every
    # intermediate Linear except the last.  (For a 1-layer MLP the single Linear IS followed
    # by SiLU in the PyTorch module.)
    return i == 0 or i < n_layers - 1


def _mlp_fused_kernel(*refs, n_layers: int):
    """refs = (x_ref, w0_ref, b0_ref, w1_ref, b1_ref, ..., o_ref).

    Whole MLP for one batch tile. Intermediates stay in vregs/VMEM; only the final layer
    output is stored. Matmul operands are the (bf16) compute dtype, accumulation/bias/SiLU
    are f32 (SiLU stays f32 so the EUP path also works on v5e, which has no bf16 EUP).
    """
    x_ref = refs[0]
    o_ref = refs[1 + 2 * n_layers]
    compute_dtype = x_ref.dtype

    h = x_ref[...]                              # [tb, K_pad], compute dtype -> native MXU operand
    for i in range(n_layers):
        w = refs[1 + 2 * i][...]                # [K_pad, N_pad], compute dtype (no per-step cast)
        b = refs[2 + 2 * i][...]                # [1, N_pad], f32; broadcasts over batch
        acc = jnp.dot(h, w, preferred_element_type=jnp.float32) + b
        if _silu_after(i, n_layers):
            acc = acc * jax.nn.sigmoid(acc)     # SiLU in f32 (EUP logistic)
        if i < n_layers - 1:
            h = acc.astype(compute_dtype)       # back to bf16 for the next MXU pass
        else:
            o_ref[...] = acc.astype(o_ref.dtype)


def prepare_mlp_params(params, in_features, *, compute_dtype=jnp.bfloat16):
    """Pad (lane-dense) and cast the weights ONCE, hoisted out of the per-call hot path.

    params: list of (w, b) with w: [in_i, out_i] (transposed vs PyTorch), b: [out_i].
    Weights -> compute_dtype (bf16) zero-padded to multiples of 128; biases -> f32 [1, N_pad].
    Zero padding is mathematically inert (zero W rows/cols, zero bias lanes, SiLU(0)=0).
    """
    n = len(params)
    assert n >= 1
    true_outs = [w.shape[1] for (w, _) in params]
    in_pad = _round_up(in_features, 128)
    out_pads = [_round_up(d, 128) for d in true_outs]

    flat = []
    prev_pad, prev_true = in_pad, in_features
    for (w, b), op, to in zip(params, out_pads, true_outs):
        assert w.shape == (prev_true, to), "layer in_features mismatch"
        w_p = jnp.zeros((prev_pad, op), compute_dtype).at[:prev_true, :to].set(
            w.astype(compute_dtype))
        b_p = jnp.zeros((1, op), jnp.float32).at[0, :to].set(b.astype(jnp.float32))
        flat += [w_p, b_p]
        prev_pad, prev_true = op, to

    return dict(
        flat_params=flat, n_layers=n, in_features=in_features, in_pad=in_pad,
        out_pads=out_pads, true_outs=true_outs, compute_dtype=compute_dtype,
    )


def mlp_forward(x, prepared, *, block_b: int = 512):
    """Fused MLP forward on TPU via a single Pallas kernel.

    x:        [B, in_features].
    prepared: output of prepare_mlp_params (padded bf16 weights, f32 biases, metadata).
    """
    B, IN = x.shape
    n = prepared["n_layers"]
    assert IN == prepared["in_features"], "input feature mismatch"
    cdt = prepared["compute_dtype"]
    in_pad = prepared["in_pad"]
    out_pads = prepared["out_pads"]

    # --- batch tiling (dtype-aware sublane multiple; >=2 tiles when possible for v7x) -----
    sub = _sublane_multiple(cdt)
    b_ceil = _round_up(B, sub)
    tb = min(block_b, b_ceil)
    b_pad = _round_up(b_ceil, tb)
    if b_pad // tb < 2 and b_ceil >= 2 * sub:
        tb = _round_up((b_ceil + 1) // 2, sub)
        b_pad = _round_up(b_ceil, tb)
    grid_b = b_pad // tb

    # --- input pad/cast (skipped when already aligned) -------------------------------------
    if (b_pad, in_pad) == (B, IN) and x.dtype == cdt:
        x_p = x
    else:
        x_p = jnp.zeros((b_pad, in_pad), cdt).at[:B, :IN].set(x.astype(cdt))

    # --- cost estimate (hint for the XLA scheduler around the custom call) -----------------
    k_dims = [in_pad] + out_pads[:-1]
    flops = 2 * b_pad * sum(k * o for k, o in zip(k_dims, out_pads))
    transcendentals = b_pad * sum(out_pads[i] for i in range(n) if _silu_after(i, n))
    bytes_accessed = (
        x_p.size * jnp.dtype(cdt).itemsize
        + sum(a.size * jnp.dtype(a.dtype).itemsize for a in prepared["flat_params"])
        + b_pad * out_pads[-1] * jnp.dtype(x.dtype).itemsize
    )

    kernel = functools.partial(_mlp_fused_kernel, n_layers=n)

    def build(weight_buffering):
        def const_spec(shape):
            # Constant index_map: fetched once. Single-buffer when supported (halves VMEM).
            if weight_buffering is None:
                return pl.BlockSpec(shape, lambda i: (0, 0))
            return pl.BlockSpec(shape, lambda i: (0, 0), pipeline_mode=weight_buffering)

        in_specs = [pl.BlockSpec((tb, in_pad), lambda i: (i, 0))]
        prev = in_pad
        for op in out_pads:
            in_specs.append(const_spec((prev, op)))   # weight
            in_specs.append(const_spec((1, op)))      # bias
            prev = op
        out_spec = pl.BlockSpec((tb, out_pads[-1]), lambda i: (i, 0))

        return pl.pallas_call(
            kernel,
            out_shape=jax.ShapeDtypeStruct((b_pad, out_pads[-1]), x.dtype),
            grid_spec=pltpu.PrefetchScalarGridSpec(
                num_scalar_prefetch=0,
                grid=(grid_b,),                    # batch tiles; shardable across TCs on v7x
                in_specs=in_specs,
                out_specs=out_spec,
            ),
            compiler_params=pltpu.CompilerParams(
                dimension_semantics=("parallel",),
                vmem_limit_bytes=_vmem_limit_bytes(),
            ),
            cost_estimate=pl.CostEstimate(
                flops=flops, transcendentals=transcendentals, bytes_accessed=bytes_accessed),
        )

    try:
        out_p = build(pl.Buffered(1))(x_p, *prepared["flat_params"])
    except Exception:
        # pipeline_mode / Buffered not supported by this JAX build: default double-buffering.
        out_p = build(None)(x_p, *prepared["flat_params"])

    return out_p[:B, : prepared["true_outs"][-1]]


def init_mlp_params(key, in_channels, hidden_channels):
    """Deterministic init mimicking nn.Linear default (uniform +/- 1/sqrt(fan_in)).
    Weights stored as [in, out] (transposed vs PyTorch's [out, in])."""
    dims = [in_channels] + list(hidden_channels)
    params = []
    for i in range(len(dims) - 1):
        fan_in, fan_out = dims[i], dims[i + 1]
        key, kw, kb = jax.random.split(key, 3)
        bound = 1.0 / jnp.sqrt(jnp.float32(fan_in))
        w = jax.random.uniform(kw, (fan_in, fan_out), jnp.float32, -bound, bound)
        b = jax.random.uniform(kb, (fan_out,), jnp.float32, -bound, bound)
        params.append((w, b))
    return params


def mlp_reference(x, params):
    """Pure-JAX f32 reference matching the PyTorch MLP."""
    n = len(params)
    h = x
    for i, (w, b) in enumerate(params):
        h = h @ w + b
        if _silu_after(i, n):
            h = h * jax.nn.sigmoid(h)
    return h


if __name__ == "__main__":
    key = jax.random.PRNGKey(0)
    in_channels = 16
    hidden_channels = [32, 32, 8]
    batch = 8

    kx, kp = jax.random.split(key)
    x = jax.random.normal(kx, (batch, in_channels), jnp.float32)
    params = init_mlp_params(kp, in_channels, hidden_channels)

    # Pad + cast weights once (hoisted out of the hot path).
    prepared = prepare_mlp_params(params, in_channels)

    out = mlp_forward(x, prepared)
    out = jax.block_until_ready(out)

    ref = mlp_reference(x, params)
    assert out.shape == (batch, hidden_channels[-1])
    # bf16 MXU operands -> loosened tolerance vs the f32 reference.
    assert jnp.allclose(out, ref, atol=5e-2, rtol=5e-2), "mismatch vs reference"

    print("KERNEL_OK")
</pallas_src>

<mosaic_0001>
module attributes {stable_mosaic.version = 11 : i64} {
  func.func @_mlp_fused_kernel(%arg0: i32, %arg1: memref<16x128xbf16, #tpu.memory_space<vmem>>, %arg2: memref<128x128xbf16, #tpu.memory_space<vmem>>, %arg3: memref<1x128xf32, #tpu.memory_space<vmem>>, %arg4: memref<128x128xbf16, #tpu.memory_space<vmem>>, %arg5: memref<1x128xf32, #tpu.memory_space<vmem>>, %arg6: memref<128x128xbf16, #tpu.memory_space<vmem>>, %arg7: memref<1x128xf32, #tpu.memory_space<vmem>>, %arg8: memref<16x128xf32, #tpu.memory_space<vmem>>) attributes {dimension_semantics = [#tpu.dimension_semantics<parallel>], iteration_bounds = array<i64: 1>, scalar_prefetch = 0 : i64, scratch_operands = 0 : i64, tpu.core_type = #tpu.core_type<tc>, window_params = [{transform_indices = @transform_0, window_bounds = array<i64: 16, 128>}, {pipeline_mode = #tpu.pipeline_mode<synchronous>, transform_indices = @transform_1, window_bounds = array<i64: 128, 128>}, {pipeline_mode = #tpu.pipeline_mode<synchronous>, transform_indices = @transform_2, window_bounds = array<i64: 1, 128>}, {pipeline_mode = #tpu.pipeline_mode<synchronous>, transform_indices = @transform_3, window_bounds = array<i64: 128, 128>}, {pipeline_mode = #tpu.pipeline_mode<synchronous>, transform_indices = @transform_4, window_bounds = array<i64: 1, 128>}, {pipeline_mode = #tpu.pipeline_mode<synchronous>, transform_indices = @transform_5, window_bounds = array<i64: 128, 128>}, {pipeline_mode = #tpu.pipeline_mode<synchronous>, transform_indices = @transform_6, window_bounds = array<i64: 1, 128>}, {transform_indices = @transform_7, window_bounds = array<i64: 16, 128>}]} {
    %c0 = arith.constant 0 : index
    %c0_0 = arith.constant 0 : index
    %0 = vector.load %arg1[%c0, %c0_0] : memref<16x128xbf16, #tpu.memory_space<vmem>>, vector<16x128xbf16>
    %c0_1 = arith.constant 0 : index
    %c0_2 = arith.constant 0 : index
    %1 = vector.load %arg2[%c0_1, %c0_2] : memref<128x128xbf16, #tpu.memory_space<vmem>>, vector<128x128xbf16>
    %c0_3 = arith.constant 0 : index
    %c0_4 = arith.constant 0 : index
    %2 = vector.load %arg3[%c0_3, %c0_4] : memref<1x128xf32, #tpu.memory_space<vmem>>, vector<1x128xf32>
    %cst = arith.constant dense<0.000000e+00> : vector<16x128xf32>
    %3 = tpu.matmul %0, %1, %cst {dimension_numbers = #tpu.dot_dimension_numbers<[1], [0], [0], [1], [0, 0, 1, 1], [], []>} : vector<16x128xbf16>, vector<128x128xbf16>, vector<16x128xf32> -> vector<16x128xf32>
    %4 = vector.broadcast %2 : vector<1x128xf32> to vector<16x128xf32>
    %5 = arith.addf %3, %4 : vector<16x128xf32>
    %6 = arith.negf %5 : vector<16x128xf32>
    %7 = math.exp %6 : vector<16x128xf32>
    %cst_5 = arith.constant 1.000000e+00 : f32
    %8 = vector.broadcast %cst_5 : f32 to vector<16x128xf32>
    %9 = arith.addf %8, %7 : vector<16x128xf32>
    %10 = arith.divf %8, %9 : vector<16x128xf32>
    %11 = arith.mulf %5, %10 : vector<16x128xf32>
    %12 = arith.truncf %11 : vector<16x128xf32> to vector<16x128xbf16>
    %c0_6 = arith.constant 0 : index
    %c0_7 = arith.constant 0 : index
    %13 = vector.load %arg4[%c0_6, %c0_7] : memref<128x128xbf16, #tpu.memory_space<vmem>>, vector<128x128xbf16>
    %c0_8 = arith.constant 0 : index
    %c0_9 = arith.constant 0 : index
    %14 = vector.load %arg5[%c0_8, %c0_9] : memref<1x128xf32, #tpu.memory_space<vmem>>, vector<1x128xf32>
    %cst_10 = arith.constant dense<0.000000e+00> : vector<16x128xf32>
    %15 = tpu.matmul %12, %13, %cst_10 {dimension_numbers = #tpu.dot_dimension_numbers<[1], [0], [0], [1], [0, 0, 1, 1], [], []>} : vector<16x128xbf16>, vector<128x128xbf16>, vector<16x128xf32> -> vector<16x128xf32>
    %16 = vector.broadcast %14 : vector<1x128xf32> to vector<16x128xf32>
    %17 = arith.addf %15, %16 : vector<16x128xf32>
    %18 = arith.negf %17 : vector<16x128xf32>
    %19 = math.exp %18 : vector<16x128xf32>
    %cst_11 = arith.constant 1.000000e+00 : f32
    %20 = vector.broadcast %cst_11 : f32 to vector<16x128xf32>
    %21 = arith.addf %20, %19 : vector<16x128xf32>
    %22 = arith.divf %20, %21 : vector<16x128xf32>
    %23 = arith.mulf %17, %22 : vector<16x128xf32>
    %24 = arith.truncf %23 : vector<16x128xf32> to vector<16x128xbf16>
    %c0_12 = arith.constant 0 : index
    %c0_13 = arith.constant 0 : index
    %25 = vector.load %arg6[%c0_12, %c0_13] : memref<128x128xbf16, #tpu.memory_space<vmem>>, vector<128x128xbf16>
    %c0_14 = arith.constant 0 : index
    %c0_15 = arith.constant 0 : index
    %26 = vector.load %arg7[%c0_14, %c0_15] : memref<1x128xf32, #tpu.memory_space<vmem>>, vector<1x128xf32>
    %cst_16 = arith.constant dense<0.000000e+00> : vector<16x128xf32>
    %27 = tpu.matmul %24, %25, %cst_16 {dimension_numbers = #tpu.dot_dimension_numbers<[1], [0], [0], [1], [0, 0, 1, 1], [], []>} : vector<16x128xbf16>, vector<128x128xbf16>, vector<16x128xf32> -> vector<16x128xf32>
    %28 = vector.broadcast %26 : vector<1x128xf32> to vector<16x128xf32>
    %29 = arith.addf %27, %28 : vector<16x128xf32>
    %c0_17 = arith.constant 0 : index
    %c0_18 = arith.constant 0 : index
    %30 = vector.load %arg8[%c0_17, %c0_18] : memref<16x128xf32, #tpu.memory_space<vmem>>, vector<16x128xf32>
    tpu.vector_store %arg8[%c0_17, %c0_18], %29 {strides = array<i32>} : memref<16x128xf32, #tpu.memory_space<vmem>>, vector<16x128xf32>,
    return
  }
  func.func @transform_0(%arg0: i32) -> (i32, i32) {
    %c0_i32 = arith.constant 0 : i32
    %c0_i32_0 = arith.constant 0 : i32
    return %arg0, %c0_i32 : i32, i32
  }
  func.func @transform_1(%arg0: i32) -> (i32, i32) {
    %c0_i32 = arith.constant 0 : i32
    %c0_i32_0 = arith.constant 0 : i32
    %c0_i32_1 = arith.constant 0 : i32
    return %c0_i32, %c0_i32_0 : i32, i32
  }
  func.func @transform_2(%arg0: i32) -> (i32, i32) {
    %c0_i32 = arith.constant 0 : i32
    %c0_i32_0 = arith.constant 0 : i32
    %c0_i32_1 = arith.constant 0 : i32
    return %c0_i32, %c0_i32_0 : i32, i32
  }
  func.func @transform_3(%arg0: i32) -> (i32, i32) {
    %c0_i32 = arith.constant 0 : i32
    %c0_i32_0 = arith.constant 0 : i32
    %c0_i32_1 = arith.constant 0 : i32
    return %c0_i32, %c0_i32_0 : i32, i32
  }
  func.func @transform_4(%arg0: i32) -> (i32, i32) {
    %c0_i32 = arith.constant 0 : i32
    %c0_i32_0 = arith.constant 0 : i32
    %c0_i32_1 = arith.constant 0 : i32
    return %c0_i32, %c0_i32_0 : i32, i32
  }
  func.func @transform_5(%arg0: i32) -> (i32, i32) {
    %c0_i32 = arith.constant 0 : i32
    %c0_i32_0 = arith.constant 0 : i32
    %c0_i32_1 = arith.constant 0 : i32
    return %c0_i32, %c0_i32_0 : i32, i32
  }
  func.func @transform_6(%arg0: i32) -> (i32, i32) {
    %c0_i32 = arith.constant 0 : i32
    %c0_i32_0 = arith.constant 0 : i32
    %c0_i32_1 = arith.constant 0 : i32
    return %c0_i32, %c0_i32_0 : i32, i32
  }
  func.func @transform_7(%arg0: i32) -> (i32, i32) {
    %c0_i32 = arith.constant 0 : i32
    %c0_i32_0 = arith.constant 0 : i32
    return %arg0, %c0_i32 : i32, i32
  }
}

module attributes {stable_mosaic.version = 11 : i64} {
  func.func @_mlp_fused_kernel(%arg0: i32, %arg1: memref<16x128xbf16, #tpu.memory_space<vmem>>, %arg2: memref<128x128xbf16, #tpu.memory_space<vmem>>, %arg3: memref<1x128xf32, #tpu.memory_space<vmem>>, %arg4: memref<128x128xbf16, #tpu.memory_space<vmem>>, %arg5: memref<1x128xf32, #tpu.memory_space<vmem>>, %arg6: memref<128x128xbf16, #tpu.memory_space<vmem>>, %arg7: memref<1x128xf32, #tpu.memory_space<vmem>>, %arg8: memref<16x128xf32, #tpu.memory_space<vmem>>) attributes {dimension_semantics = [#tpu.dimension_semantics<parallel>], iteration_bounds = array<i64: 1>, scalar_prefetch = 0 : i64, scratch_operands = 0 : i64, tpu.core_type = #tpu.core_type<tc>, window_params = [{transform_indices = @transform_0, window_bounds = array<i64: 16, 128>}, {pipeline_mode = #tpu.pipeline_mode<synchronous>, transform_indices = @transform_1, window_bounds = array<i64: 128, 128>}, {pipeline_mode = #tpu.pipeline_mode<synchronous>, transform_indices = @transform_2, window_bounds = array<i64: 1, 128>}, {pipeline_mode = #tpu.pipeline_mode<synchronous>, transform_indices = @transform_3, window_bounds = array<i64: 128, 128>}, {pipeline_mode = #tpu.pipeline_mode<synchronous>, transform_indices = @transform_4, window_bounds = array<i64: 1, 128>}, {pipeline_mode = #tpu.pipeline_mode<synchronous>, transform_indices = @transform_5, window_bounds = array<i64: 128, 128>}, {pipeline_mode = #tpu.pipeline_mode<synchronous>, transform_indices = @transform_6, window_bounds = array<i64: 1, 128>}, {transform_indices = @transform_7, window_bounds = array<i64: 16, 128>}]} {
    %c0 = arith.constant 0 : index
    %c0_0 = arith.constant 0 : index
    %0 = vector.load %arg1[%c0, %c0_0] : memref<16x128xbf16, #tpu.memory_space<vmem>>, vector<16x128xbf16>
    %c0_1 = arith.constant 0 : index
    %c0_2 = arith.constant 0 : index
    %1 = vector.load %arg2[%c0_1, %c0_2] : memref<128x128xbf16, #tpu.memory_space<vmem>>, vector<128x128xbf16>
    %c0_3 = arith.constant 0 : index
    %c0_4 = arith.constant 0 : index
    %2 = vector.load %arg3[%c0_3, %c0_4] : memref<1x128xf32, #tpu.memory_space<vmem>>, vector<1x128xf32>
    %cst = arith.constant dense<0.000000e+00> : vector<16x128xf32>
    %3 = tpu.matmul %0, %1, %cst {dimension_numbers = #tpu.dot_dimension_numbers<[1], [0], [0], [1], [0, 0, 1, 1], [], []>} : vector<16x128xbf16>, vector<128x128xbf16>, vector<16x128xf32> -> vector<16x128xf32>
    %4 = vector.broadcast %2 : vector<1x128xf32> to vector<16x128xf32>
    %5 = arith.addf %3, %4 : vector<16x128xf32>
    %6 = arith.negf %5 : vector<16x128xf32>
    %7 = math.exp %6 : vector<16x128xf32>
    %cst_5 = arith.constant 1.000000e+00 : f32
    %8 = vector.broadcast %cst_5 : f32 to vector<16x128xf32>
    %9 = arith.addf %8, %7 : vector<16x128xf32>
    %10 = arith.divf %8, %9 : vector<16x128xf32>
    %11 = arith.mulf %5, %10 : vector<16x128xf32>
    %12 = arith.truncf %11 : vector<16x128xf32> to vector<16x128xbf16>
    %c0_6 = arith.constant 0 : index
    %c0_7 = arith.constant 0 : index
    %13 = vector.load %arg4[%c0_6, %c0_7] : memref<128x128xbf16, #tpu.memory_space<vmem>>, vector<128x128xbf16>
    %c0_8 = arith.constant 0 : index
    %c0_9 = arith.constant 0 : index
    %14 = vector.load %arg5[%c0_8, %c0_9] : memref<1x128xf32, #tpu.memory_space<vmem>>, vector<1x128xf32>
    %cst_10 = arith.constant dense<0.000000e+00> : vector<16x128xf32>
    %15 = tpu.matmul %12, %13, %cst_10 {dimension_numbers = #tpu.dot_dimension_numbers<[1], [0], [0], [1], [0, 0, 1, 1], [], []>} : vector<16x128xbf16>, vector<128x128xbf16>, vector<16x128xf32> -> vector<16x128xf32>
    %16 = vector.broadcast %14 : vector<1x128xf32> to vector<16x128xf32>
    %17 = arith.addf %15, %16 : vector<16x128xf32>
    %18 = arith.negf %17 : vector<16x128xf32>
    %19 = math.exp %18 : vector<16x128xf32>
    %cst_11 = arith.constant 1.000000e+00 : f32
    %20 = vector.broadcast %cst_11 : f32 to vector<16x128xf32>
    %21 = arith.addf %20, %19 : vector<16x128xf32>
    %22 = arith.divf %20, %21 : vector<16x128xf32>
    %23 = arith.mulf %17, %22 : vector<16x128xf32>
    %24 = arith.truncf %23 : vector<16x128xf32> to vector<16x128xbf16>
    %c0_12 = arith.constant 0 : index
    %c0_13 = arith.constant 0 : index
    %25 = vector.load %arg6[%c0_12, %c0_13] : memref<128x128xbf16, #tpu.memory_space<vmem>>, vector<128x128xbf16>
    %c0_14 = arith.constant 0 : index
    %c0_15 = arith.constant 0 : index
    %26 = vector.load %arg7[%c0_14, %c0_15] : memref<1x128xf32, #tpu.memory_space<vmem>>, vector<1x128xf32>
    %cst_16 = arith.constant dense<0.000000e+00> : vector<16x128xf32>
    %27 = tpu.matmul %24, %25, %cst_16 {dimension_numbers = #tpu.dot_dimension_numbers<[1], [0], [0], [1], [0, 0, 1, 1], [], []>} : vector<16x128xbf16>, vector<128x128xbf16>, vector<16x128xf32> -> vector<16x128xf32>
    %28 = vector.broadcast %26 : vector<1x128xf32> to vector<16x128xf32>
    %29 = arith.addf %27, %28 : vector<16x128xf32>
    %c0_17 = arith.constant 0 : index
    %c0_18 = arith.constant 0 : index
    %30 = vector.load %arg8[%c0_17, %c0_18] : memref<16x128xf32, #tpu.memory_space<vmem>>, vector<16x128xf32>
    tpu.vector_store %arg8[%c0_17, %c0_18], %29 {strides = array<i32>} : memref<16x128xf32, #tpu.memory_space<vmem>>, vector<16x128xf32>,
    return
  }
  func.func @transform_0(%arg0: i32) -> (i32, i32) {
    %c0_i32 = arith.constant 0 : i32
    %c0_i32_0 = arith.constant 0 : i32
    return %arg0, %c0_i32 : i32, i32
  }
  func.func @transform_1(%arg0: i32) -> (i32, i32) {
    %c0_i32 = arith.constant 0 : i32
    %c0_i32_0 = arith.constant 0 : i32
    %c0_i32_1 = arith.constant 0 : i32
    return %c0_i32, %c0_i32_0 : i32, i32
  }
  func.func @transform_2(%arg0: i32) -> (i32, i32) {
    %c0_i32 = arith.constant 0 : i32
    %c0_i32_0 = arith.constant 0 : i32
    %c0_i32_1 = arith.constant 0 : i32
    return %c0_i32, %c0_i32_0 : i32, i32
  }
  func.func @transform_3(%arg0: i32) -> (i32, i32) {
    %c0_i32 = arith.constant 0 : i32
    %c0_i32_0 = arith.constant 0 : i32
    %c0_i32_1 = arith.constant 0 : i32
    return %c0_i32, %c0_i32_0 : i32, i32
  }
  func.func @transform_4(%arg0: i32) -> (i32, i32) {
    %c0_i32 = arith.constant 0 : i32
    %c0_i32_0 = arith.constant 0 : i32
    %c0_i32_1 = arith.constant 0 : i32
    return %c0_i32, %c0_i32_0 : i32, i32
  }
  func.func @transform_5(%arg0: i32) -> (i32, i32) {
    %c0_i32 = arith.constant 0 : i32
    %c0_i32_0 = arith.constant 0 : i32
    %c0_i32_1 = arith.constant 0 : i32
    return %c0_i32, %c0_i32_0 : i32, i32
  }
  func.func @transform_6(%arg0: i32) -> (i32, i32) {
    %c0_i32 = arith.constant 0 : i32
    %c0_i32_0 = arith.constant 0 : i32
    %c0_i32_1 = arith.constant 0 : i32
    return %c0_i32, %c0_i32_0 : i32, i32
  }
  func.func @transform_7(%arg0: i32) -> (i32, i32) {
    %c0_i32 = arith.constant 0 : i32
    %c0_i32_0 = arith.constant 0 : i32
    return %arg0, %c0_i32 : i32, i32
  }
}

</mosaic_0001>

<llo_original>
// kernel: tpu_custom_call.1
$region0: #{tpu_custom_call.1}
  #allocation0 [shape = 'u32[]', space=smem, size = 0x4, offset = 0x4, fixed_abs, tag = 'smem constant byte address 0x4 - core index']
  #allocation1 [shape = 'u32[144,128]{1,0:T(1,128)}', space=vmem, size = 0x12000, scoped, tag = 'internal scratch']
  %s0 = inlined_call_operand.hbm [shape: bf16[16,128], index: 0, kind: input, shape index: {}]
  %s1 = inlined_call_operand.hbm [shape: bf16[128,128], index: 1, kind: input, shape index: {}]
  %s2 = inlined_call_operand.vmem [shape: f32[1,128], index: 2, kind: input, shape index: {}]
  %s3 = inlined_call_operand.hbm [shape: bf16[128,128], index: 3, kind: input, shape index: {}]
  %s4 = inlined_call_operand.vmem [shape: f32[1,128], index: 4, kind: input, shape index: {}]
  %s5 = inlined_call_operand.hbm [shape: bf16[128,128], index: 5, kind: input, shape index: {}]
  %s6 = inlined_call_operand.vmem [shape: f32[1,128], index: 6, kind: input, shape index: {}]
  %s7 = inlined_call_operand.hbm [shape: f32[16,128], index: 7, kind: output, shape index: {}]
  %s8 = sld [smem:[#allocation0]]
  $region54: #{tpu_custom_call.1} parent=0
    _
  %s10 = ssub.s32 1, %s8
  %s11 = scalar_select 0, %s10, %s8
  $region1: #{tpu_custom_call.1} parent=0
    #allocation2 [shape = 'u8[4096]{0}', space=vmem, size = 0x1000, scoped, tag = 'input window, operand 0, single buffered']
    #allocation3 [shape = 's32[1]{0}', space=sflag, size = 0x4, scoped, tag = 'scoped memory for tpu_custom_call.1']
    #allocation4 [shape = 's32[1]{0}', space=sflag, size = 0x4, scoped, tag = 'scoped memory for tpu_custom_call.1']
    #allocation5 [shape = 'u8[32768]{0}', space=vmem, size = 0x8000, scoped, tag = 'input window, operand 1, single buffered']
    #allocation6 [shape = 's32[1]{0}', space=sflag, size = 0x4, scoped, tag = 'scoped memory for tpu_custom_call.1']
    #allocation7 [shape = 'u8[32768]{0}', space=vmem, size = 0x8000, scoped, tag = 'input window, operand 3, single buffered']
    #allocation8 [shape = 'u8[32768]{0}', space=vmem, size = 0x8000, scoped, tag = 'input window, operand 5, single buffered']
    #allocation9 [shape = 's32[1]{0}', space=sflag, size = 0x4, scoped, tag = 'scoped memory for tpu_custom_call.1']
    #allocation10 [shape = 'u8[8192]{0}', space=vmem, size = 0x2000, scoped, tag = 'output window, operand 0, single buffered']
    %12 = vsyncpa [#allocation3], 0
    %13 = vsyncpa [#allocation6], 0
    %14 = vsyncpa [#allocation9], 0
    %15 = vsyncpa [#allocation4], 0
    // Predicated region
    $region2: #{tpu_custom_call.1} parent=1 // pred_check
      _
    $region3: #{tpu_custom_call.1} parent=1 // pred_check_branch
      %17 = sbr.rel (0) target = $region5
    $region4: #{tpu_custom_call.1} parent=1 // pred_region
      %s19 = ssub.s32 128, 128
      %20 = vsyncadd [#allocation3], %s19
      %s21 = sshll.u32 [#allocation2], 4
      %s22 = int_to_ptr.vmem [resolvable:$true] %s21
      %27 = dma.hbm_to_vmem [thread:$0]  %s0, 128, %s22, [#allocation3], 64, 64, 4
    $region5: #{tpu_custom_call.1} parent=1 // pred_fallthru
      _
    // Predicated region
    $region6: #{tpu_custom_call.1} parent=1 // pred_check
      _
    $region7: #{tpu_custom_call.1} parent=1 // pred_check_branch
      %29 = sbr.rel (0) target = $region9
    $region8: #{tpu_custom_call.1} parent=1 // pred_region
      %s31 = ssub.s32 1024, 1024
      %32 = vsyncadd [#allocation6], %s31
      %s33 = sshll.u32 [#allocation5], 4
      %s34 = int_to_ptr.vmem [resolvable:$true] %s33
      %39 = dma.hbm_to_vmem [thread:$0]  %s1, 1024, %s34, [#allocation6], 64, 64, 4
    $region9: #{tpu_custom_call.1} parent=1 // pred_fallthru
      _
    // Predicated region
    $region10: #{tpu_custom_call.1} parent=1 // pred_check
      _
    $region11: #{tpu_custom_call.1} parent=1 // pred_check_branch
      %41 = sbr.rel (0) target = $region13
    $region12: #{tpu_custom_call.1} parent=1 // pred_region
      _
    $region13: #{tpu_custom_call.1} parent=1 // pred_fallthru
      _
    // Predicated region
    $region14: #{tpu_custom_call.1} parent=1 // pred_check
      _
    $region15: #{tpu_custom_call.1} parent=1 // pred_check_branch
      %43 = sbr.rel (0) target = $region17
    $region16: #{tpu_custom_call.1} parent=1 // pred_region
      %s45 = ssub.s32 1024, 1024
      %46 = vsyncadd [#allocation6], %s45
      %s47 = sshll.u32 [#allocation7], 4
      %s48 = int_to_ptr.vmem [resolvable:$true] %s47
      %53 = dma.hbm_to_vmem [thread:$0]  %s3, 1024, %s48, [#allocation6], 64, 64, 4
    $region17: #{tpu_custom_call.1} parent=1 // pred_fallthru
      _
    // Predicated region
    $region18: #{tpu_custom_call.1} parent=1 // pred_check
      _
    $region19: #{tpu_custom_call.1} parent=1 // pred_check_branch
      %55 = sbr.rel (0) target = $region21
    $region20: #{tpu_custom_call.1} parent=1 // pred_region
      _
    $region21: #{tpu_custom_call.1} parent=1 // pred_fallthru
      _
    // Predicated region
    $region22: #{tpu_custom_call.1} parent=1 // pred_check
      _
    $region23: #{tpu_custom_call.1} parent=1 // pred_check_branch
      %57 = sbr.rel (0) target = $region25
    $region24: #{tpu_custom_call.1} parent=1 // pred_region
      %s59 = ssub.s32 1024, 1024
      %60 = vsyncadd [#allocation9], %s59
      %s61 = sshll.u32 [#allocation8], 4
      %s62 = int_to_ptr.vmem [resolvable:$true] %s61
      %67 = dma.hbm_to_vmem [thread:$0]  %s5, 1024, %s62, [#allocation9], 64, 64, 4
    $region25: #{tpu_custom_call.1} parent=1 // pred_fallthru
      _
    // Predicated region
    $region26: #{tpu_custom_call.1} parent=1 // pred_check
      _
    $region27: #{tpu_custom_call.1} parent=1 // pred_check_branch
      %69 = sbr.rel (0) target = $region29
    $region28: #{tpu_custom_call.1} parent=1 // pred_region
      _
    $region29: #{tpu_custom_call.1} parent=1 // pred_fallthru
      _
    // Predicated region
    $region30: #{tpu_custom_call.1} parent=1 // pred_check
      _
    $region31: #{tpu_custom_call.1} parent=1 // pred_check_branch
      %71 = sbr.rel (0) target = $region33
    $region32: #{tpu_custom_call.1} parent=1 // pred_region
      %72 = dma.done [#allocation3], 128
    $region33: #{tpu_custom_call.1} parent=1 // pred_fallthru
      _
    // Predicated region
    $region34: #{tpu_custom_call.1} parent=1 // pred_check
      _
    $region35: #{tpu_custom_call.1} parent=1 // pred_check_branch
      %74 = sbr.rel (0) target = $region37
    $region36: #{tpu_custom_call.1} parent=1 // pred_region
      %75 = dma.done [#allocation6], 1024
    $region37: #{tpu_custom_call.1} parent=1 // pred_fallthru
      _
    // Predicated region
    $region38: #{tpu_custom_call.1} parent=1 // pred_check
      _
    $region39: #{tpu_custom_call.1} parent=1 // pred_check_branch
      %77 = sbr.rel (0) target = $region41
    $region40: #{tpu_custom_call.1} parent=1 // pred_region
      %78 = dma.done [#allocation6], 1024
    $region41: #{tpu_custom_call.1} parent=1 // pred_fallthru
      _
    // Predicated region
    $region42: #{tpu_custom_call.1} parent=1 // pred_check
      _
    $region43: #{tpu_custom_call.1} parent=1 // pred_check_branch
      %80 = sbr.rel (0) target = $region45
    $region44: #{tpu_custom_call.1} parent=1 // pred_region
      %81 = dma.done [#allocation9], 1024
    $region45: #{tpu_custom_call.1} parent=1 // pred_fallthru
      _
    %v83 = vld [vmem:[#allocation2] sm:$0xf]
    %v84 = vld [vmem:[#allocation2 + $0x4] sm:$0xf]
    %v85 = vld [vmem:[#allocation5] sm:$0xf]
    %v86 = vld [vmem:[#allocation5 + $0x4] sm:$0xf]
    %v87 = vld [vmem:[#allocation5 + $0x8] sm:$0xf]
    %v88 = vld [vmem:[#allocation5 + $0xc] sm:$0xf]
    %v89 = vld [vmem:[#allocation5 + $0x10] sm:$0xf]
    %v90 = vld [vmem:[#allocation5 + $0x14] sm:$0xf]
    %v91 = vld [vmem:[#allocation5 + $0x18] sm:$0xf]
    %v92 = vld [vmem:[#allocation5 + $0x1c] sm:$0xf]
    %v93 = vld [vmem:[#allocation5 + $0x20] sm:$0xf]
    %v94 = vld [vmem:[#allocation5 + $0x24] sm:$0xf]
    %v95 = vld [vmem:[#allocation5 + $0x28] sm:$0xf]
    %v96 = vld [vmem:[#allocation5 + $0x2c] sm:$0xf]
    %v97 = vld [vmem:[#allocation5 + $0x30] sm:$0xf]
    %v98 = vld [vmem:[#allocation5 + $0x34] sm:$0xf]
    %v99 = vld [vmem:[#allocation5 + $0x38] sm:$0xf]
    %v100 = vld [vmem:[#allocation5 + $0x3c] sm:$0xf]
    %v101 = vld [vmem:[%s2] sm:$0x1]
    %v103 = vlaneseq
    %v104 = vshrl.u32 %v103, 7
    %v105 = vsub.s32 0, %v104
    %v106 = vrot.slane %v101, %v105
    %v110 = vunpack.c.l.b16 %v83
    %v111 = vunpack.c.l.b16 %v84
    %v112 = vpack.c.b16 %v111, %v110
    %v130 = vunpack.c.l.b16 %v85
    %v131 = vunpack.c.l.b16 %v86
    %v132 = vunpack.c.l.b16 %v87
    %v133 = vunpack.c.l.b16 %v88
    %v134 = vunpack.c.l.b16 %v89
    %v135 = vunpack.c.l.b16 %v90
    %v136 = vunpack.c.l.b16 %v91
    %v137 = vunpack.c.l.b16 %v92
    %v138 = vunpack.c.l.b16 %v93
    %v139 = vunpack.c.l.b16 %v94
    %v140 = vunpack.c.l.b16 %v95
    %v141 = vunpack.c.l.b16 %v96
    %v142 = vunpack.c.l.b16 %v97
    %v143 = vunpack.c.l.b16 %v98
    %v144 = vunpack.c.l.b16 %v99
    %v145 = vunpack.c.l.b16 %v100
    %v146 = vpack.c.b16 %v131, %v130
    %v147 = vpack.c.b16 %v133, %v132
    %v148 = vpack.c.b16 %v135, %v134
    %v149 = vpack.c.b16 %v137, %v136
    %v150 = vpack.c.b16 %v139, %v138
    %v151 = vpack.c.b16 %v141, %v140
    %v152 = vpack.c.b16 %v143, %v142
    %v153 = vpack.c.b16 %v145, %v144
    %162 = vmatprep.subr.bf16.mxu0 0
    %163 = vmatpush1.bf16.msra.mxu0 %v146
    %164 = vmatprep.subr.bf16.mxu0 0
    %165 = vmatpush1.bf16.msra.mxu0 %v147
    %166 = vmatprep.subr.bf16.mxu0 0
    %167 = vmatpush1.bf16.msra.mxu0 %v148
    %168 = vmatprep.subr.bf16.mxu0 0
    %169 = vmatpush1.bf16.msra.mxu0 %v149
    %170 = vmatprep.subr.bf16.mxu0 0
    %171 = vmatpush1.bf16.msra.mxu0 %v150
    %172 = vmatprep.subr.bf16.mxu0 0
    %173 = vmatpush1.bf16.msra.mxu0 %v151
    %174 = vmatprep.subr.bf16.mxu0 0
    %175 = vmatpush1.bf16.msra.mxu0 %v152
    %176 = vmatprep.subr.bf16.mxu0 0
    %177 = vmatpush1.bf16.msra.mxu0 %v153
    %178 = vmatprep.subr.bf16.mxu0 0
    %179 = vmatpush1.bf16.msra.mxu0 0
    %180 = vmatprep.subr.bf16.mxu0 0
    %181 = vmatpush1.bf16.msra.mxu0 0
    %182 = vmatprep.subr.bf16.mxu0 0
    %183 = vmatpush1.bf16.msra.mxu0 0
    %184 = vmatprep.subr.bf16.mxu0 0
    %185 = vmatpush1.bf16.msra.mxu0 0
    %186 = vmatprep.subr.bf16.mxu0 0
    %187 = vmatpush1.bf16.msra.mxu0 0
    %188 = vmatprep.subr.bf16.mxu0 0
    %189 = vmatpush1.bf16.msra.mxu0 0
    %190 = vmatprep.subr.bf16.mxu0 0
    %191 = vmatpush1.bf16.msra.mxu0 0
    %192 = vmatprep.subr.bf16.mxu0 0
    %193 = vmatpush1.bf16.msra.mxu0 0
    %194 = vmatprep.mubr.bf16.mxu0 0
    %195 = vmatmul.mubr.bf16.gmra.mrb[0].mxu0 %v112
    %v196 = vpop.f32.mrb[0].mxu0
    %v197 = vadd.f32 %v106, %v196
    %v198 = vpop.f32.mrb[0].mxu0
    %v199 = vpop.f32.mrb[0].mxu0
    %v200 = vadd.f32 %v106, %v199
    %v201 = vpop.f32.mrb[0].mxu0
    %202 = vdwg.mxu0
    %v203 = vxor.u32 %v197, 2147483648
    %v204 = vxor.u32 %v200, 2147483648
    %v205 = vmul.f32 %v203, 1.442695
    %v206 = vpow.pop %v205
    %v207 = vmul.f32 %v204, 1.442695
    %v208 = vpow.pop %v207
    %v209 = vadd.f32 %v206, 1.0
    %v210 = vadd.f32 %v208, 1.0
    %v211 = vrcp.pop %v209
    %v212 = vmul.f32 1.0, %v211
    %v213 = vrcp.pop %v210
    %v214 = vmul.f32 1.0, %v213
    %v215 = vmul.f32 %v197, %v212
    %v216 = vmul.f32 %v200, %v214
    %v217 = vpack.c.bf16 %v216, %v215
    %v218 = vld [vmem:[#allocation7] sm:$0xf]
    %v219 = vld [vmem:[#allocation7 + $0x4] sm:$0xf]
    %v220 = vld [vmem:[#allocation7 + $0x8] sm:$0xf]
    %v221 = vld [vmem:[#allocation7 + $0xc] sm:$0xf]
    %v222 = vld [vmem:[#allocation7 + $0x10] sm:$0xf]
    %v223 = vld [vmem:[#allocation7 + $0x14] sm:$0xf]
    %v224 = vld [vmem:[#allocation7 + $0x18] sm:$0xf]
    %v225 = vld [vmem:[#allocation7 + $0x1c] sm:$0xf]
    %v226 = vld [vmem:[#allocation7 + $0x20] sm:$0xf]
    %v227 = vld [vmem:[#allocation7 + $0x24] sm:$0xf]
    %v228 = vld [vmem:[#allocation7 + $0x28] sm:$0xf]
    %v229 = vld [vmem:[#allocation7 + $0x2c] sm:$0xf]
    %v230 = vld [vmem:[#allocation7 + $0x30] sm:$0xf]
    %v231 = vld [vmem:[#allocation7 + $0x34] sm:$0xf]
    %v232 = vld [vmem:[#allocation7 + $0x38] sm:$0xf]
    %v233 = vld [vmem:[#allocation7 + $0x3c] sm:$0xf]
    %v234 = vld [vmem:[%s4] sm:$0x1]
    %v236 = vlaneseq
    %v237 = vshrl.u32 %v236, 7
    %v238 = vsub.s32 0, %v237
    %v239 = vrot.slane %v234, %v238
    %v257 = vunpack.c.l.b16 %v218
    %v258 = vunpack.c.l.b16 %v219
    %v259 = vunpack.c.l.b16 %v220
    %v260 = vunpack.c.l.b16 %v221
    %v261 = vunpack.c.l.b16 %v222
    %v262 = vunpack.c.l.b16 %v223
    %v263 = vunpack.c.l.b16 %v224
    %v264 = vunpack.c.l.b16 %v225
    %v265 = vunpack.c.l.b16 %v226
    %v266 = vunpack.c.l.b16 %v227
    %v267 = vunpack.c.l.b16 %v228
    %v268 = vunpack.c.l.b16 %v229
    %v269 = vunpack.c.l.b16 %v230
    %v270 = vunpack.c.l.b16 %v231
    %v271 = vunpack.c.l.b16 %v232
    %v272 = vunpack.c.l.b16 %v233
    %v273 = vpack.c.b16 %v258, %v257
    %v274 = vpack.c.b16 %v260, %v259
    %v275 = vpack.c.b16 %v262, %v261
    %v276 = vpack.c.b16 %v264, %v263
    %v277 = vpack.c.b16 %v266, %v265
    %v278 = vpack.c.b16 %v268, %v267
    %v279 = vpack.c.b16 %v270, %v269
    %v280 = vpack.c.b16 %v272, %v271
    %289 = vmatprep.subr.bf16.mxu0 0
    %290 = vmatpush1.bf16.msra.mxu0 %v273
    %291 = vmatprep.subr.bf16.mxu0 0
    %292 = vmatpush1.bf16.msra.mxu0 %v274
    %293 = vmatprep.subr.bf16.mxu0 0
    %294 = vmatpush1.bf16.msra.mxu0 %v275
    %295 = vmatprep.subr.bf16.mxu0 0
    %296 = vmatpush1.bf16.msra.mxu0 %v276
    %297 = vmatprep.subr.bf16.mxu0 0
    %298 = vmatpush1.bf16.msra.mxu0 %v277
    %299 = vmatprep.subr.bf16.mxu0 0
    %300 = vmatpush1.bf16.msra.mxu0 %v278
    %301 = vmatprep.subr.bf16.mxu0 0
    %302 = vmatpush1.bf16.msra.mxu0 %v279
    %303 = vmatprep.subr.bf16.mxu0 0
    %304 = vmatpush1.bf16.msra.mxu0 %v280
    %305 = vmatprep.subr.bf16.mxu0 0
    %306 = vmatpush1.bf16.msra.mxu0 0
    %307 = vmatprep.subr.bf16.mxu0 0
    %308 = vmatpush1.bf16.msra.mxu0 0
    %309 = vmatprep.subr.bf16.mxu0 0
    %310 = vmatpush1.bf16.msra.mxu0 0
    %311 = vmatprep.subr.bf16.mxu0 0
    %312 = vmatpush1.bf16.msra.mxu0 0
    %313 = vmatprep.subr.bf16.mxu0 0
    %314 = vmatpush1.bf16.msra.mxu0 0
    %315 = vmatprep.subr.bf16.mxu0 0
    %316 = vmatpush1.bf16.msra.mxu0 0
    %317 = vmatprep.subr.bf16.mxu0 0
    %318 = vmatpush1.bf16.msra.mxu0 0
    %319 = vmatprep.subr.bf16.mxu0 0
    %320 = vmatpush1.bf16.msra.mxu0 0
    %321 = vmatprep.mubr.bf16.mxu0 0
    %322 = vmatmul.mubr.bf16.gmra.mrb[0].mxu0 %v217
    %v323 = vpop.f32.mrb[0].mxu0
    %v324 = vadd.f32 %v239, %v323
    %v325 = vpop.f32.mrb[0].mxu0
    %v326 = vpop.f32.mrb[0].mxu0
    %v327 = vadd.f32 %v239, %v326
    %v328 = vpop.f32.mrb[0].mxu0
    %329 = vdwg.mxu0
    %v330 = vxor.u32 %v324, 2147483648
    %v331 = vxor.u32 %v327, 2147483648
    %v332 = vmul.f32 %v330, 1.442695
    %v333 = vpow.pop %v332
    %v334 = vmul.f32 %v331, 1.442695
    %v335 = vpow.pop %v334
    %v336 = vadd.f32 %v333, 1.0
    %v337 = vadd.f32 %v335, 1.0
    %v338 = vrcp.pop %v336
    %v339 = vmul.f32 1.0, %v338
    %v340 = vrcp.pop %v337
    %v341 = vmul.f32 1.0, %v340
    %v342 = vmul.f32 %v324, %v339
    %v343 = vmul.f32 %v327, %v341
    %v344 = vpack.c.bf16 %v343, %v342
    %v345 = vld [vmem:[#allocation8] sm:$0xf]
    %v346 = vld [vmem:[#allocation8 + $0x4] sm:$0xf]
    %v347 = vld [vmem:[#allocation8 + $0x8] sm:$0xf]
    %v348 = vld [vmem:[#allocation8 + $0xc] sm:$0xf]
    %v349 = vld [vmem:[#allocation8 + $0x10] sm:$0xf]
    %v350 = vld [vmem:[#allocation8 + $0x14] sm:$0xf]
    %v351 = vld [vmem:[#allocation8 + $0x18] sm:$0xf]
    %v352 = vld [vmem:[#allocation8 + $0x1c] sm:$0xf]
    %v353 = vld [vmem:[#allocation8 + $0x20] sm:$0xf]
    %v354 = vld [vmem:[#allocation8 + $0x24] sm:$0xf]
    %v355 = vld [vmem:[#allocation8 + $0x28] sm:$0xf]
    %v356 = vld [vmem:[#allocation8 + $0x2c] sm:$0xf]
    %v357 = vld [vmem:[#allocation8 + $0x30] sm:$0xf]
    %v358 = vld [vmem:[#allocation8 + $0x34] sm:$0xf]
    %v359 = vld [vmem:[#allocation8 + $0x38] sm:$0xf]
    %v360 = vld [vmem:[#allocation8 + $0x3c] sm:$0xf]
    %v361 = vld [vmem:[%s6] sm:$0x1]
    %v363 = vlaneseq
    %v364 = vshrl.u32 %v363, 7
    %v365 = vsub.s32 0, %v364
    %v366 = vrot.slane %v361, %v365
    %v384 = vunpack.c.l.b16 %v345
    %v385 = vunpack.c.l.b16 %v346
    %v386 = vunpack.c.l.b16 %v347
    %v387 = vunpack.c.l.b16 %v348
    %v388 = vunpack.c.l.b16 %v349
    %v389 = vunpack.c.l.b16 %v350
    %v390 = vunpack.c.l.b16 %v351
    %v391 = vunpack.c.l.b16 %v352
    %v392 = vunpack.c.l.b16 %v353
    %v393 = vunpack.c.l.b16 %v354
    %v394 = vunpack.c.l.b16 %v355
    %v395 = vunpack.c.l.b16 %v356
    %v396 = vunpack.c.l.b16 %v357
    %v397 = vunpack.c.l.b16 %v358
    %v398 = vunpack.c.l.b16 %v359
    %v399 = vunpack.c.l.b16 %v360
    %v400 = vpack.c.b16 %v385, %v384
    %v401 = vpack.c.b16 %v387, %v386
    %v402 = vpack.c.b16 %v389, %v388
    %v403 = vpack.c.b16 %v391, %v390
    %v404 = vpack.c.b16 %v393, %v392
    %v405 = vpack.c.b16 %v395, %v394
    %v406 = vpack.c.b16 %v397, %v396
    %v407 = vpack.c.b16 %v399, %v398
    %416 = vmatprep.subr.bf16.mxu0 0
    %417 = vmatpush1.bf16.msra.mxu0 %v400
    %418 = vmatprep.subr.bf16.mxu0 0
    %419 = vmatpush1.bf16.msra.mxu0 %v401
    %420 = vmatprep.subr.bf16.mxu0 0
    %421 = vmatpush1.bf16.msra.mxu0 %v402
    %422 = vmatprep.subr.bf16.mxu0 0
    %423 = vmatpush1.bf16.msra.mxu0 %v403
    %424 = vmatprep.subr.bf16.mxu0 0
    %425 = vmatpush1.bf16.msra.mxu0 %v404
    %426 = vmatprep.subr.bf16.mxu0 0
    %427 = vmatpush1.bf16.msra.mxu0 %v405
    %428 = vmatprep.subr.bf16.mxu0 0
    %429 = vmatpush1.bf16.msra.mxu0 %v406
    %430 = vmatprep.subr.bf16.mxu0 0
    %431 = vmatpush1.bf16.msra.mxu0 %v407
    %432 = vmatprep.subr.bf16.mxu0 0
    %433 = vmatpush1.bf16.msra.mxu0 0
    %434 = vmatprep.subr.bf16.mxu0 0
    %435 = vmatpush1.bf16.msra.mxu0 0
    %436 = vmatprep.subr.bf16.mxu0 0
    %437 = vmatpush1.bf16.msra.mxu0 0
    %438 = vmatprep.subr.bf16.mxu0 0
    %439 = vmatpush1.bf16.msra.mxu0 0
    %440 = vmatprep.subr.bf16.mxu0 0
    %441 = vmatpush1.bf16.msra.mxu0 0
    %442 = vmatprep.subr.bf16.mxu0 0
    %443 = vmatpush1.bf16.msra.mxu0 0
    %444 = vmatprep.subr.bf16.mxu0 0
    %445 = vmatpush1.bf16.msra.mxu0 0
    %446 = vmatprep.subr.bf16.mxu0 0
    %447 = vmatpush1.bf16.msra.mxu0 0
    %448 = vmatprep.mubr.bf16.mxu0 0
    %449 = vmatmul.mubr.bf16.gmra.mrb[0].mxu0 %v344
    %v450 = vpop.f32.mrb[0].mxu0
    %v451 = vadd.f32 %v366, %v450
    %v452 = vpop.f32.mrb[0].mxu0
    %v453 = vpop.f32.mrb[0].mxu0
    %v454 = vadd.f32 %v366, %v453
    %v455 = vpop.f32.mrb[0].mxu0
    %456 = vdwg.mxu0
    %457 = vst [vmem:[#allocation10] sm:$0xff] %v451
    %458 = vst [vmem:[#allocation10 + $0x8] sm:$0xff] %v454
    // Predicated region
    $region46: #{tpu_custom_call.1} parent=1 // pred_check
      _
    $region47: #{tpu_custom_call.1} parent=1 // pred_check_branch
      %460 = sbr.rel (0) target = $region49
    $region48: #{tpu_custom_call.1} parent=1 // pred_region
      %s462 = ssub.s32 256, 256
      %463 = vsyncadd [#allocation4], %s462
      %s464 = sshll.u32 [#allocation10], 4
      %s465 = int_to_ptr.vmem [resolvable:$true] %s464
      %470 = dma.vmem_to_hbm [thread:$0]  %s465, 256, %s7, [#allocation4], 128, 128, 8
    $region49: #{tpu_custom_call.1} parent=1 // pred_fallthru
      _
    // Predicated region
    $region50: #{tpu_custom_call.1} parent=1 // pred_check
      _
    $region51: #{tpu_custom_call.1} parent=1 // pred_check_branch
      %472 = sbr.rel (0) target = $region53
    $region52: #{tpu_custom_call.1} parent=1 // pred_region
      %473 = dma.done [#allocation4], 256
    $region53: #{tpu_custom_call.1} parent=1 // pred_fallthru
      _
    %474 = vsyncpa [#allocation3], 1
    %475 = vsyncpa [#allocation6], 1
    %476 = vsyncpa [#allocation9], 1
    %477 = vsyncpa [#allocation4], 1

// kernel: tpu_custom_call.1
$region0: #{tpu_custom_call.1}
  #allocation0 [shape = 'u32[]', space=smem, size = 0x4, offset = 0x4, fixed_abs, tag = 'smem constant byte address 0x4 - core index']
  #allocation1 [shape = 'u32[144,128]{1,0:T(1,128)}', space=vmem, size = 0x12000, scoped, tag = 'internal scratch']
  %s0 = inlined_call_operand.hbm [shape: bf16[16,128], index: 0, kind: input, shape index: {}]
  %s1 = inlined_call_operand.hbm [shape: bf16[128,128], index: 1, kind: input, shape index: {}]
  %s2 = inlined_call_operand.vmem [shape: f32[1,128], index: 2, kind: input, shape index: {}]
  %s3 = inlined_call_operand.hbm [shape: bf16[128,128], index: 3, kind: input, shape index: {}]
  %s4 = inlined_call_operand.vmem [shape: f32[1,128], index: 4, kind: input, shape index: {}]
  %s5 = inlined_call_operand.hbm [shape: bf16[128,128], index: 5, kind: input, shape index: {}]
  %s6 = inlined_call_operand.vmem [shape: f32[1,128], index: 6, kind: input, shape index: {}]
  %s7 = inlined_call_operand.hbm [shape: f32[16,128], index: 7, kind: output, shape index: {}]
  %s8 = sld [smem:[#allocation0]]
  $region54: #{tpu_custom_call.1} parent=0
    _
  %s10 = ssub.s32 1, %s8
  %s11 = scalar_select 0, %s10, %s8
  $region1: #{tpu_custom_call.1} parent=0
    #allocation2 [shape = 'u8[4096]{0}', space=vmem, size = 0x1000, scoped, tag = 'input window, operand 0, single buffered']
    #allocation3 [shape = 's32[1]{0}', space=sflag, size = 0x4, scoped, tag = 'scoped memory for tpu_custom_call.1']
    #allocation4 [shape = 's32[1]{0}', space=sflag, size = 0x4, scoped, tag = 'scoped memory for tpu_custom_call.1']
    #allocation5 [shape = 'u8[32768]{0}', space=vmem, size = 0x8000, scoped, tag = 'input window, operand 1, single buffered']
    #allocation6 [shape = 's32[1]{0}', space=sflag, size = 0x4, scoped, tag = 'scoped memory for tpu_custom_call.1']
    #allocation7 [shape = 'u8[32768]{0}', space=vmem, size = 0x8000, scoped, tag = 'input window, operand 3, single buffered']
    #allocation8 [shape = 'u8[32768]{0}', space=vmem, size = 0x8000, scoped, tag = 'input window, operand 5, single buffered']
    #allocation9 [shape = 's32[1]{0}', space=sflag, size = 0x4, scoped, tag = 'scoped memory for tpu_custom_call.1']
    #allocation10 [shape = 'u8[8192]{0}', space=vmem, size = 0x2000, scoped, tag = 'output window, operand 0, single buffered']
    %12 = vsyncpa [#allocation3], 0
    %13 = vsyncpa [#allocation6], 0
    %14 = vsyncpa [#allocation9], 0
    %15 = vsyncpa [#allocation4], 0
    // Predicated region
    $region2: #{tpu_custom_call.1} parent=1 // pred_check
      _
    $region3: #{tpu_custom_call.1} parent=1 // pred_check_branch
      %17 = sbr.rel (0) target = $region5
    $region4: #{tpu_custom_call.1} parent=1 // pred_region
      %s19 = ssub.s32 128, 128
      %20 = vsyncadd [#allocation3], %s19
      %s21 = sshll.u32 [#allocation2], 4
      %s22 = int_to_ptr.vmem [resolvable:$true] %s21
      %27 = dma.hbm_to_vmem [thread:$0]  %s0, 128, %s22, [#allocation3], 64, 64, 4
    $region5: #{tpu_custom_call.1} parent=1 // pred_fallthru
      _
    // Predicated region
    $region6: #{tpu_custom_call.1} parent=1 // pred_check
      _
    $region7: #{tpu_custom_call.1} parent=1 // pred_check_branch
      %29 = sbr.rel (0) target = $region9
    $region8: #{tpu_custom_call.1} parent=1 // pred_region
      %s31 = ssub.s32 1024, 1024
      %32 = vsyncadd [#allocation6], %s31
      %s33 = sshll.u32 [#allocation5], 4
      %s34 = int_to_ptr.vmem [resolvable:$true] %s33
      %39 = dma.hbm_to_vmem [thread:$0]  %s1, 1024, %s34, [#allocation6], 64, 64, 4
    $region9: #{tpu_custom_call.1} parent=1 // pred_fallthru
      _
    // Predicated region
    $region10: #{tpu_custom_call.1} parent=1 // pred_check
      _
    $region11: #{tpu_custom_call.1} parent=1 // pred_check_branch
      %41 = sbr.rel (0) target = $region13
    $region12: #{tpu_custom_call.1} parent=1 // pred_region
      _
    $region13: #{tpu_custom_call.1} parent=1 // pred_fallthru
      _
    // Predicated region
    $region14: #{tpu_custom_call.1} parent=1 // pred_check
      _
    $region15: #{tpu_custom_call.1} parent=1 // pred_check_branch
      %43 = sbr.rel (0) target = $region17
    $region16: #{tpu_custom_call.1} parent=1 // pred_region
      %s45 = ssub.s32 1024, 1024
      %46 = vsyncadd [#allocation6], %s45
      %s47 = sshll.u32 [#allocation7], 4
      %s48 = int_to_ptr.vmem [resolvable:$true] %s47
      %53 = dma.hbm_to_vmem [thread:$0]  %s3, 1024, %s48, [#allocation6], 64, 64, 4
    $region17: #{tpu_custom_call.1} parent=1 // pred_fallthru
      _
    // Predicated region
    $region18: #{tpu_custom_call.1} parent=1 // pred_check
      _
    $region19: #{tpu_custom_call.1} parent=1 // pred_check_branch
      %55 = sbr.rel (0) target = $region21
    $region20: #{tpu_custom_call.1} parent=1 // pred_region
      _
    $region21: #{tpu_custom_call.1} parent=1 // pred_fallthru
      _
    // Predicated region
    $region22: #{tpu_custom_call.1} parent=1 // pred_check
      _
    $region23: #{tpu_custom_call.1} parent=1 // pred_check_branch
      %57 = sbr.rel (0) target = $region25
    $region24: #{tpu_custom_call.1} parent=1 // pred_region
      %s59 = ssub.s32 1024, 1024
      %60 = vsyncadd [#allocation9], %s59
      %s61 = sshll.u32 [#allocation8], 4
      %s62 = int_to_ptr.vmem [resolvable:$true] %s61
      %67 = dma.hbm_to_vmem [thread:$0]  %s5, 1024, %s62, [#allocation9], 64, 64, 4
    $region25: #{tpu_custom_call.1} parent=1 // pred_fallthru
      _
    // Predicated region
    $region26: #{tpu_custom_call.1} parent=1 // pred_check
      _
    $region27: #{tpu_custom_call.1} parent=1 // pred_check_branch
      %69 = sbr.rel (0) target = $region29
    $region28: #{tpu_custom_call.1} parent=1 // pred_region
      _
    $region29: #{tpu_custom_call.1} parent=1 // pred_fallthru
      _
    // Predicated region
    $region30: #{tpu_custom_call.1} parent=1 // pred_check
      _
    $region31: #{tpu_custom_call.1} parent=1 // pred_check_branch
      %71 = sbr.rel (0) target = $region33
    $region32: #{tpu_custom_call.1} parent=1 // pred_region
      %72 = dma.done [#allocation3], 128
    $region33: #{tpu_custom_call.1} parent=1 // pred_fallthru
      _
    // Predicated region
    $region34: #{tpu_custom_call.1} parent=1 // pred_check
      _
    $region35: #{tpu_custom_call.1} parent=1 // pred_check_branch
      %74 = sbr.rel (0) target = $region37
    $region36: #{tpu_custom_call.1} parent=1 // pred_region
      %75 = dma.done [#allocation6], 1024
    $region37: #{tpu_custom_call.1} parent=1 // pred_fallthru
      _
    // Predicated region
    $region38: #{tpu_custom_call.1} parent=1 // pred_check
      _
    $region39: #{tpu_custom_call.1} parent=1 // pred_check_branch
      %77 = sbr.rel (0) target = $region41
    $region40: #{tpu_custom_call.1} parent=1 // pred_region
      %78 = dma.done [#allocation6], 1024
    $region41: #{tpu_custom_call.1} parent=1 // pred_fallthru
      _
    // Predicated region
    $region42: #{tpu_custom_call.1} parent=1 // pred_check
      _
    $region43: #{tpu_custom_call.1} parent=1 // pred_check_branch
      %80 = sbr.rel (0) target = $region45
    $region44: #{tpu_custom_call.1} parent=1 // pred_region
      %81 = dma.done [#allocation9], 1024
    $region45: #{tpu_custom_call.1} parent=1 // pred_fallthru
      _
    %v83 = vld [vmem:[#allocation2] sm:$0xf]
    %v84 = vld [vmem:[#allocation2 + $0x4] sm:$0xf]
    %v85 = vld [vmem:[#allocation5] sm:$0xf]
    %v86 = vld [vmem:[#allocation5 + $0x4] sm:$0xf]
    %v87 = vld [vmem:[#allocation5 + $0x8] sm:$0xf]
    %v88 = vld [vmem:[#allocation5 + $0xc] sm:$0xf]
    %v89 = vld [vmem:[#allocation5 + $0x10] sm:$0xf]
    %v90 = vld [vmem:[#allocation5 + $0x14] sm:$0xf]
    %v91 = vld [vmem:[#allocation5 + $0x18] sm:$0xf]
    %v92 = vld [vmem:[#allocation5 + $0x1c] sm:$0xf]
    %v93 = vld [vmem:[#allocation5 + $0x20] sm:$0xf]
    %v94 = vld [vmem:[#allocation5 + $0x24] sm:$0xf]
    %v95 = vld [vmem:[#allocation5 + $0x28] sm:$0xf]
    %v96 = vld [vmem:[#allocation5 + $0x2c] sm:$0xf]
    %v97 = vld [vmem:[#allocation5 + $0x30] sm:$0xf]
    %v98 = vld [vmem:[#allocation5 + $0x34] sm:$0xf]
    %v99 = vld [vmem:[#allocation5 + $0x38] sm:$0xf]
    %v100 = vld [vmem:[#allocation5 + $0x3c] sm:$0xf]
    %v101 = vld [vmem:[%s2] sm:$0x1]
    %v103 = vlaneseq
    %v104 = vshrl.u32 %v103, 7
    %v105 = vsub.s32 0, %v104
    %v106 = vrot.slane %v101, %v105
    %v110 = vunpack.c.l.b16 %v83
    %v111 = vunpack.c.l.b16 %v84
    %v112 = vpack.c.b16 %v111, %v110
    %v130 = vunpack.c.l.b16 %v85
    %v131 = vunpack.c.l.b16 %v86
    %v132 = vunpack.c.l.b16 %v87
    %v133 = vunpack.c.l.b16 %v88
    %v134 = vunpack.c.l.b16 %v89
    %v135 = vunpack.c.l.b16 %v90
    %v136 = vunpack.c.l.b16 %v91
    %v137 = vunpack.c.l.b16 %v92
    %v138 = vunpack.c.l.b16 %v93
    %v139 = vunpack.c.l.b16 %v94
    %v140 = vunpack.c.l.b16 %v95
    %v141 = vunpack.c.l.b16 %v96
    %v142 = vunpack.c.l.b16 %v97
    %v143 = vunpack.c.l.b16 %v98
    %v144 = vunpack.c.l.b16 %v99
    %v145 = vunpack.c.l.b16 %v100
    %v146 = vpack.c.b16 %v131, %v130
    %v147 = vpack.c.b16 %v133, %v132
    %v148 = vpack.c.b16 %v135, %v134
    %v149 = vpack.c.b16 %v137, %v136
    %v150 = vpack.c.b16 %v139, %v138
    %v151 = vpack.c.b16 %v141, %v140
    %v152 = vpack.c.b16 %v143, %v142
    %v153 = vpack.c.b16 %v145, %v144
    %162 = vmatprep.subr.bf16.mxu0 0
    %163 = vmatpush1.bf16.msra.mxu0 %v146
    %164 = vmatprep.subr.bf16.mxu0 0
    %165 = vmatpush1.bf16.msra.mxu0 %v147
    %166 = vmatprep.subr.bf16.mxu0 0
    %167 = vmatpush1.bf16.msra.mxu0 %v148
    %168 = vmatprep.subr.bf16.mxu0 0
    %169 = vmatpush1.bf16.msra.mxu0 %v149
    %170 = vmatprep.subr.bf16.mxu0 0
    %171 = vmatpush1.bf16.msra.mxu0 %v150
    %172 = vmatprep.subr.bf16.mxu0 0
    %173 = vmatpush1.bf16.msra.mxu0 %v151
    %174 = vmatprep.subr.bf16.mxu0 0
    %175 = vmatpush1.bf16.msra.mxu0 %v152
    %176 = vmatprep.subr.bf16.mxu0 0
    %177 = vmatpush1.bf16.msra.mxu0 %v153
    %178 = vmatprep.subr.bf16.mxu0 0
    %179 = vmatpush1.bf16.msra.mxu0 0
    %180 = vmatprep.subr.bf16.mxu0 0
    %181 = vmatpush1.bf16.msra.mxu0 0
    %182 = vmatprep.subr.bf16.mxu0 0
    %183 = vmatpush1.bf16.msra.mxu0 0
    %184 = vmatprep.subr.bf16.mxu0 0
    %185 = vmatpush1.bf16.msra.mxu0 0
    %186 = vmatprep.subr.bf16.mxu0 0
    %187 = vmatpush1.bf16.msra.mxu0 0
    %188 = vmatprep.subr.bf16.mxu0 0
    %189 = vmatpush1.bf16.msra.mxu0 0
    %190 = vmatprep.subr.bf16.mxu0 0
    %191 = vmatpush1.bf16.msra.mxu0 0
    %192 = vmatprep.subr.bf16.mxu0 0
    %193 = vmatpush1.bf16.msra.mxu0 0
    %194 = vmatprep.mubr.bf16.mxu0 0
    %195 = vmatmul.mubr.bf16.gmra.mrb[0].mxu0 %v112
    %v196 = vpop.f32.mrb[0].mxu0
    %v197 = vadd.f32 %v106, %v196
    %v198 = vpop.f32.mrb[0].mxu0
    %v199 = vpop.f32.mrb[0].mxu0
    %v200 = vadd.f32 %v106, %v199
    %v201 = vpop.f32.mrb[0].mxu0
    %202 = vdwg.mxu0
    %v203 = vxor.u32 %v197, 2147483648
    %v204 = vxor.u32 %v200, 2147483648
    %v205 = vmul.f32 %v203, 1.442695
    %v206 = vpow.pop %v205
    %v207 = vmul.f32 %v204, 1.442695
    %v208 = vpow.pop %v207
    %v209 = vadd.f32 %v206, 1.0
    %v210 = vadd.f32 %v208, 1.0
    %v211 = vrcp.pop %v209
    %v212 = vmul.f32 1.0, %v211
    %v213 = vrcp.pop %v210
    %v214 = vmul.f32 1.0, %v213
    %v215 = vmul.f32 %v197, %v212
    %v216 = vmul.f32 %v200, %v214
    %v217 = vpack.c.bf16 %v216, %v215
    %v218 = vld [vmem:[#allocation7] sm:$0xf]
    %v219 = vld [vmem:[#allocation7 + $0x4] sm:$0xf]
    %v220 = vld [vmem:[#allocation7 + $0x8] sm:$0xf]
    %v221 = vld [vmem:[#allocation7 + $0xc] sm:$0xf]
    %v222 = vld [vmem:[#allocation7 + $0x10] sm:$0xf]
    %v223 = vld [vmem:[#allocation7 + $0x14] sm:$0xf]
    %v224 = vld [vmem:[#allocation7 + $0x18] sm:$0xf]
    %v225 = vld [vmem:[#allocation7 + $0x1c] sm:$0xf]
    %v226 = vld [vmem:[#allocation7 + $0x20] sm:$0xf]
    %v227 = vld [vmem:[#allocation7 + $0x24] sm:$0xf]
    %v228 = vld [vmem:[#allocation7 + $0x28] sm:$0xf]
    %v229 = vld [vmem:[#allocation7 + $0x2c] sm:$0xf]
    %v230 = vld [vmem:[#allocation7 + $0x30] sm:$0xf]
    %v231 = vld [vmem:[#allocation7 + $0x34] sm:$0xf]
    %v232 = vld [vmem:[#allocation7 + $0x38] sm:$0xf]
    %v233 = vld [vmem:[#allocation7 + $0x3c] sm:$0xf]
    %v234 = vld [vmem:[%s4] sm:$0x1]
    %v236 = vlaneseq
    %v237 = vshrl.u32 %v236, 7
    %v238 = vsub.s32 0, %v237
    %v239 = vrot.slane %v234, %v238
    %v257 = vunpack.c.l.b16 %v218
    %v258 = vunpack.c.l.b16 %v219
    %v259 = vunpack.c.l.b16 %v220
    %v260 = vunpack.c.l.b16 %v221
    %v261 = vunpack.c.l.b16 %v222
    %v262 = vunpack.c.l.b16 %v223
    %v263 = vunpack.c.l.b16 %v224
    %v264 = vunpack.c.l.b16 %v225
    %v265 = vunpack.c.l.b16 %v226
    %v266 = vunpack.c.l.b16 %v227
    %v267 = vunpack.c.l.b16 %v228
    %v268 = vunpack.c.l.b16 %v229
    %v269 = vunpack.c.l.b16 %v230
    %v270 = vunpack.c.l.b16 %v231
    %v271 = vunpack.c.l.b16 %v232
    %v272 = vunpack.c.l.b16 %v233
    %v273 = vpack.c.b16 %v258, %v257
    %v274 = vpack.c.b16 %v260, %v259
    %v275 = vpack.c.b16 %v262, %v261
    %v276 = vpack.c.b16 %v264, %v263
    %v277 = vpack.c.b16 %v266, %v265
    %v278 = vpack.c.b16 %v268, %v267
    %v279 = vpack.c.b16 %v270, %v269
    %v280 = vpack.c.b16 %v272, %v271
    %289 = vmatprep.subr.bf16.mxu0 0
    %290 = vmatpush1.bf16.msra.mxu0 %v273
    %291 = vmatprep.subr.bf16.mxu0 0
    %292 = vmatpush1.bf16.msra.mxu0 %v274
    %293 = vmatprep.subr.bf16.mxu0 0
    %294 = vmatpush1.bf16.msra.mxu0 %v275
    %295 = vmatprep.subr.bf16.mxu0 0
    %296 = vmatpush1.bf16.msra.mxu0 %v276
    %297 = vmatprep.subr.bf16.mxu0 0
    %298 = vmatpush1.bf16.msra.mxu0 %v277
    %299 = vmatprep.subr.bf16.mxu0 0
    %300 = vmatpush1.bf16.msra.mxu0 %v278
    %301 = vmatprep.subr.bf16.mxu0 0
    %302 = vmatpush1.bf16.msra.mxu0 %v279
    %303 = vmatprep.subr.bf16.mxu0 0
    %304 = vmatpush1.bf16.msra.mxu0 %v280
    %305 = vmatprep.subr.bf16.mxu0 0
    %306 = vmatpush1.bf16.msra.mxu0 0
    %307 = vmatprep.subr.bf16.mxu0 0
    %308 = vmatpush1.bf16.msra.mxu0 0
    %309 = vmatprep.subr.bf16.mxu0 0
    %310 = vmatpush1.bf16.msra.mxu0 0
    %311 = vmatprep.subr.bf16.mxu0 0
    %312 = vmatpush1.bf16.msra.mxu0 0
    %313 = vmatprep.subr.bf16.mxu0 0
    %314 = vmatpush1.bf16.msra.mxu0 0
    %315 = vmatprep.subr.bf16.mxu0 0
    %316 = vmatpush1.bf16.msra.mxu0 0
    %317 = vmatprep.subr.bf16.mxu0 0
    %318 = vmatpush1.bf16.msra.mxu0 0
    %319 = vmatprep.subr.bf16.mxu0 0
    %320 = vmatpush1.bf16.msra.mxu0 0
    %321 = vmatprep.mubr.bf16.mxu0 0
    %322 = vmatmul.mubr.bf16.gmra.mrb[0].mxu0 %v217
    %v323 = vpop.f32.mrb[0].mxu0
    %v324 = vadd.f32 %v239, %v323
    %v325 = vpop.f32.mrb[0].mxu0
    %v326 = vpop.f32.mrb[0].mxu0
    %v327 = vadd.f32 %v239, %v326
    %v328 = vpop.f32.mrb[0].mxu0
    %329 = vdwg.mxu0
    %v330 = vxor.u32 %v324, 2147483648
    %v331 = vxor.u32 %v327, 2147483648
    %v332 = vmul.f32 %v330, 1.442695
    %v333 = vpow.pop %v332
    %v334 = vmul.f32 %v331, 1.442695
    %v335 = vpow.pop %v334
    %v336 = vadd.f32 %v333, 1.0
    %v337 = vadd.f32 %v335, 1.0
    %v338 = vrcp.pop %v336
    %v339 = vmul.f32 1.0, %v338
    %v340 = vrcp.pop %v337
    %v341 = vmul.f32 1.0, %v340
    %v342 = vmul.f32 %v324, %v339
    %v343 = vmul.f32 %v327, %v341
    %v344 = vpack.c.bf16 %v343, %v342
    %v345 = vld [vmem:[#allocation8] sm:$0xf]
    %v346 = vld [vmem:[#allocation8 + $0x4] sm:$0xf]
    %v347 = vld [vmem:[#allocation8 + $0x8] sm:$0xf]
    %v348 = vld [vmem:[#allocation8 + $0xc] sm:$0xf]
    %v349 = vld [vmem:[#allocation8 + $0x10] sm:$0xf]
    %v350 = vld [vmem:[#allocation8 + $0x14] sm:$0xf]
    %v351 = vld [vmem:[#allocation8 + $0x18] sm:$0xf]
    %v352 = vld [vmem:[#allocation8 + $0x1c] sm:$0xf]
    %v353 = vld [vmem:[#allocation8 + $0x20] sm:$0xf]
    %v354 = vld [vmem:[#allocation8 + $0x24] sm:$0xf]
    %v355 = vld [vmem:[#allocation8 + $0x28] sm:$0xf]
    %v356 = vld [vmem:[#allocation8 + $0x2c] sm:$0xf]
    %v357 = vld [vmem:[#allocation8 + $0x30] sm:$0xf]
    %v358 = vld [vmem:[#allocation8 + $0x34] sm:$0xf]
    %v359 = vld [vmem:[#allocation8 + $0x38] sm:$0xf]
    %v360 = vld [vmem:[#allocation8 + $0x3c] sm:$0xf]
    %v361 = vld [vmem:[%s6] sm:$0x1]
    %v363 = vlaneseq
    %v364 = vshrl.u32 %v363, 7
    %v365 = vsub.s32 0, %v364
    %v366 = vrot.slane %v361, %v365
    %v384 = vunpack.c.l.b16 %v345
    %v385 = vunpack.c.l.b16 %v346
    %v386 = vunpack.c.l.b16 %v347
    %v387 = vunpack.c.l.b16 %v348
    %v388 = vunpack.c.l.b16 %v349
    %v389 = vunpack.c.l.b16 %v350
    %v390 = vunpack.c.l.b16 %v351
    %v391 = vunpack.c.l.b16 %v352
    %v392 = vunpack.c.l.b16 %v353
    %v393 = vunpack.c.l.b16 %v354
    %v394 = vunpack.c.l.b16 %v355
    %v395 = vunpack.c.l.b16 %v356
    %v396 = vunpack.c.l.b16 %v357
    %v397 = vunpack.c.l.b16 %v358
    %v398 = vunpack.c.l.b16 %v359
    %v399 = vunpack.c.l.b16 %v360
    %v400 = vpack.c.b16 %v385, %v384
    %v401 = vpack.c.b16 %v387, %v386
    %v402 = vpack.c.b16 %v389, %v388
    %v403 = vpack.c.b16 %v391, %v390
    %v404 = vpack.c.b16 %v393, %v392
    %v405 = vpack.c.b16 %v395, %v394
    %v406 = vpack.c.b16 %v397, %v396
    %v407 = vpack.c.b16 %v399, %v398
    %416 = vmatprep.subr.bf16.mxu0 0
    %417 = vmatpush1.bf16.msra.mxu0 %v400
    %418 = vmatprep.subr.bf16.mxu0 0
    %419 = vmatpush1.bf16.msra.mxu0 %v401
    %420 = vmatprep.subr.bf16.mxu0 0
    %421 = vmatpush1.bf16.msra.mxu0 %v402
    %422 = vmatprep.subr.bf16.mxu0 0
    %423 = vmatpush1.bf16.msra.mxu0 %v403
    %424 = vmatprep.subr.bf16.mxu0 0
    %425 = vmatpush1.bf16.msra.mxu0 %v404
    %426 = vmatprep.subr.bf16.mxu0 0
    %427 = vmatpush1.bf16.msra.mxu0 %v405
    %428 = vmatprep.subr.bf16.mxu0 0
    %429 = vmatpush1.bf16.msra.mxu0 %v406
    %430 = vmatprep.subr.bf16.mxu0 0
    %431 = vmatpush1.bf16.msra.mxu0 %v407
    %432 = vmatprep.subr.bf16.mxu0 0
    %433 = vmatpush1.bf16.msra.mxu0 0
    %434 = vmatprep.subr.bf16.mxu0 0
    %435 = vmatpush1.bf16.msra.mxu0 0
    %436 = vmatprep.subr.bf16.mxu0 0
    %437 = vmatpush1.bf16.msra.mxu0 0
    %438 = vmatprep.subr.bf16.mxu0 0
    %439 = vmatpush1.bf16.msra.mxu0 0
    %440 = vmatprep.subr.bf16.mxu0 0
    %441 = vmatpush1.bf16.msra.mxu0 0
    %442 = vmatprep.subr.bf16.mxu0 0
    %443 = vmatpush1.bf16.msra.mxu0 0
    %444 = vmatprep.subr.bf16.mxu0 0
    %445 = vmatpush1.bf16.msra.mxu0 0
    %446 = vmatprep.subr.bf16.mxu0 0
    %447 = vmatpush1.bf16.msra.mxu0 0
    %448 = vmatprep.mubr.bf16.mxu0 0
    %449 = vmatmul.mubr.bf16.gmra.mrb[0].mxu0 %v344
    %v450 = vpop.f32.mrb[0].mxu0
    %v451 = vadd.f32 %v366, %v450
    %v452 = vpop.f32.mrb[0].mxu0
    %v453 = vpop.f32.mrb[0].mxu0
    %v454 = vadd.f32 %v366, %v453
    %v455 = vpop.f32.mrb[0].mxu0
    %456 = vdwg.mxu0
    %457 = vst [vmem:[#allocation10] sm:$0xff] %v451
    %458 = vst [vmem:[#allocation10 + $0x8] sm:$0xff] %v454
    // Predicated region
    $region46: #{tpu_custom_call.1} parent=1 // pred_check
      _
    $region47: #{tpu_custom_call.1} parent=1 // pred_check_branch
      %460 = sbr.rel (0) target = $region49
    $region48: #{tpu_custom_call.1} parent=1 // pred_region
      %s462 = ssub.s32 256, 256
      %463 = vsyncadd [#allocation4], %s462
      %s464 = sshll.u32 [#allocation10], 4
      %s465 = int_to_ptr.vmem [resolvable:$true] %s464
      %470 = dma.vmem_to_hbm [thread:$0]  %s465, 256, %s7, [#allocation4], 128, 128, 8
    $region49: #{tpu_custom_call.1} parent=1 // pred_fallthru
      _
    // Predicated region
    $region50: #{tpu_custom_call.1} parent=1 // pred_check
      _
    $region51: #{tpu_custom_call.1} parent=1 // pred_check_branch
      %472 = sbr.rel (0) target = $region53
    $region52: #{tpu_custom_call.1} parent=1 // pred_region
      %473 = dma.done [#allocation4], 256
    $region53: #{tpu_custom_call.1} parent=1 // pred_fallthru
      _
    %474 = vsyncpa [#allocation3], 1
    %475 = vsyncpa [#allocation6], 1
    %476 = vsyncpa [#allocation9], 1
    %477 = vsyncpa [#allocation4], 1

</llo_original>
